<compile_context>
chip_gen: v7x
topology: tpu7x:2x2x1
jax: 0.10.0
libtpu: 0.0.40
codegen_flags: <defaults>
</compile_context>

<pallas_src>
import functools

import jax
import jax.numpy as jnp
from jax import lax
from jax.experimental import pallas as pl
from jax.experimental.pallas import tpu as pltpu


_GATHER_SLICE = 512        # lanes DMA'd per row in the gather path (multiple of 128)
_GATHER_MIN_VOCAB = 2048   # heuristic crossover: below this the streaming scan wins


def _choose_row_tile(n_rows, tr_max):
    """Row tile: multiple of 8, capped at 512, shrunk until the grid has >=4 row
    tiles when the problem allows (keeps both v7x TensorCores fed)."""
    tr = max(8, (min(int(tr_max), 512) // 8) * 8)
    while tr > 8 and -(-n_rows // tr) < 4:
        tr = max(8, ((tr // 2) // 8) * 8)
    return tr


def _pad_rows(tgt_f, msk_f, n_pad):
    pad = n_pad - tgt_f.shape[0]
    if pad:
        tgt_f = jnp.pad(tgt_f, ((0, pad), (0, 0)))
        msk_f = jnp.pad(msk_f, ((0, pad), (0, 0)))
    return tgt_f, msk_f


# --------------------------------------------------------------------------- #
# Path 1: streaming full-vocab scan (small / moderate vocab)
# --------------------------------------------------------------------------- #
def _lmc_scan_kernel(inp_ref, tgt_ref, msk_ref, out_ref, acc_ref, *,
                     n_rows, tile_rows, tile_vocab):
    i = pl.program_id(0)
    j = pl.program_id(1)

    @pl.when(j == 0)
    def _():
        acc_ref[...] = jnp.zeros_like(acc_ref)

    x = inp_ref[...]                                      # (TR, TV) log-probs
    # Compare against a loop-invariant 0..TV-1 iota; the j*TV offset lives on the
    # tiny (TR,1) target instead of the full tile (saves a full-tile int add).
    tgt_local = tgt_ref[...] - j * tile_vocab             # (TR, 1)
    col = lax.broadcasted_iota(jnp.int32, x.shape, 1)
    sel = jnp.where(col == tgt_local, x, jnp.zeros_like(x))
    # At most one nonzero per row per vocab tile -> summing in the input dtype is
    # exact; convert only the (TR,1) partial sum to f32 (no full-tile convert).
    acc_ref[...] += jnp.sum(sel, axis=1, keepdims=True).astype(jnp.float32)

    @pl.when(j == pl.num_programs(1) - 1)
    def _():
        m = msk_ref[...].astype(jnp.float32)              # (TR, 1)
        row = i * tile_rows + lax.broadcasted_iota(jnp.int32, (tile_rows, 1), 0)
        valid = row < n_rows
        # Keep this a select (not a multiply): ragged-tail VMEM can be NaN/Inf.
        out_ref[...] = jnp.where(valid, -acc_ref[...] * m,
                                 jnp.zeros_like(acc_ref))


def _scan_call(inp_f, tgt_f, msk_f, n_rows, vocab, itemsize):
    tv = vocab if vocab <= 8192 else 8192                 # lane-dense vocab tile
    tr = _choose_row_tile(n_rows, (8 << 20) // max(tv * itemsize, 1))
    n_rt = -(-n_rows // tr)
    n_vt = -(-vocab // tv)
    n_pad = n_rt * tr
    tgt_f, msk_f = _pad_rows(tgt_f, msk_f, n_pad)

    block_bytes = tr * tv * itemsize
    # >= 2*block + slack (v5e's 16 MiB scoped default can't hold double buffers),
    # <= 48 MiB so 2 buffers + scratch stay well inside v7x's 64 MiB VMEM.
    vmem_limit = int(min(max(2 * block_bytes + (8 << 20), 32 << 20), 48 << 20))

    kernel = functools.partial(_lmc_scan_kernel, n_rows=n_rows,
                               tile_rows=tr, tile_vocab=tv)
    return pl.pallas_call(
        kernel,
        out_shape=jax.ShapeDtypeStruct((n_pad, 1), jnp.float32),
        grid_spec=pltpu.PrefetchScalarGridSpec(
            num_scalar_prefetch=0,
            grid=(n_rt, n_vt),
            in_specs=[
                pl.BlockSpec((tr, tv), lambda i, j: (i, j)),
                pl.BlockSpec((tr, 1), lambda i, j: (i, 0)),
                pl.BlockSpec((tr, 1), lambda i, j: (i, 0)),
            ],
            out_specs=pl.BlockSpec((tr, 1), lambda i, j: (i, 0)),
            scratch_shapes=[pltpu.VMEM((tr, 1), jnp.float32)],
        ),
        compiler_params=pltpu.CompilerParams(
            dimension_semantics=("parallel", "arbitrary"),
            vmem_limit_bytes=vmem_limit,
        ),
        cost_estimate=pl.CostEstimate(
            flops=2 * n_rows * vocab,
            transcendentals=0,
            bytes_accessed=n_rows * vocab * itemsize + n_rows * 12,
        ),
    )(inp_f, tgt_f, msk_f)


# --------------------------------------------------------------------------- #
# Path 2: per-row DMA gather (large vocab) — input stays in HBM
# --------------------------------------------------------------------------- #
def _lmc_gather_kernel(tgt_sm, inp_hbm, tgt_ref, msk_ref, out_ref, buf, sem, *,
                       n_rows, tile_rows, slice_v, vocab):
    i = pl.program_id(0)
    base = i * tile_rows

    # Issue one small DMA per row: the SLICE-wide vocab window containing that
    # row's target.  Window start clamped into [0, V-SLICE]; padded / OOB rows
    # clamp to valid indices so no DMA ever reads out of bounds.
    @pl.loop(0, tile_rows)
    def _issue(r):
        row = jnp.minimum(base + r, n_rows - 1)
        t = jnp.clip(tgt_sm[row], 0, vocab - 1)
        c = jnp.minimum((t // slice_v) * slice_v, vocab - slice_v)
        pltpu.make_async_copy(
            inp_hbm.at[pl.ds(row, 1), pl.ds(c, slice_v)],
            buf.at[pl.ds(r, 1), :], sem).start()

    # Wait for all tile_rows copies.  The wait only needs a same-shaped
    # descriptor on the same semaphore (source need not match the start).
    @pl.loop(0, tile_rows)
    def _drain(r):
        pltpu.make_async_copy(
            inp_hbm.at[pl.ds(0, 1), pl.ds(0, slice_v)],
            buf.at[pl.ds(r, 1), :], sem).wait()

    x = buf[...]                                          # (TR, SLICE)
    tgt = tgt_ref[...]                                    # (TR, 1) int32 (raw)
    t_cl = jnp.clip(tgt, 0, vocab - 1)
    cstart = jnp.minimum((t_cl // slice_v) * slice_v, vocab - slice_v)
    tgt_local = tgt - cstart                              # in [0, SLICE) for valid targets
    col = lax.broadcasted_iota(jnp.int32, x.shape, 1)
    sel = jnp.where(col == tgt_local, x, jnp.zeros_like(x))
    g = jnp.sum(sel, axis=1, keepdims=True).astype(jnp.float32)

    m = msk_ref[...].astype(jnp.float32)
    row = base + lax.broadcasted_iota(jnp.int32, (tile_rows, 1), 0)
    valid = row < n_rows
    out_ref[...] = jnp.where(valid, -g * m, jnp.zeros_like(g))


def _gather_call(inp_f, tgt_f, msk_f, n_rows, vocab, itemsize):
    slice_v = _GATHER_SLICE
    tr = _choose_row_tile(n_rows, 256)
    n_rt = -(-n_rows // tr)
    n_pad = n_rt * tr
    tgt_f, msk_f = _pad_rows(tgt_f, msk_f, n_pad)
    tgt_sm = tgt_f[:, 0]                                  # (N_pad,) int32 -> SMEM prefetch

    kernel = functools.partial(_lmc_gather_kernel, n_rows=n_rows,
                               tile_rows=tr, slice_v=slice_v, vocab=vocab)
    return pl.pallas_call(
        kernel,
        out_shape=jax.ShapeDtypeStruct((n_pad, 1), jnp.float32),
        grid_spec=pltpu.PrefetchScalarGridSpec(
            num_scalar_prefetch=1,
            grid=(n_rt,),
            in_specs=[
                pl.BlockSpec(memory_space=pl.ANY),        # (N, V) stays in HBM
                pl.BlockSpec((tr, 1), lambda i, _: (i, 0)),
                pl.BlockSpec((tr, 1), lambda i, _: (i, 0)),
            ],
            out_specs=pl.BlockSpec((tr, 1), lambda i, _: (i, 0)),
            scratch_shapes=[
                pltpu.VMEM((tr, slice_v), inp_f.dtype),
                pltpu.SemaphoreType.DMA(()),
            ],
        ),
        compiler_params=pltpu.CompilerParams(
            dimension_semantics=("parallel",),
            vmem_limit_bytes=32 << 20,
        ),
        cost_estimate=pl.CostEstimate(
            flops=2 * n_rows * slice_v,
            transcendentals=0,
            bytes_accessed=n_rows * slice_v * itemsize + n_rows * 16,
        ),
    )(tgt_sm, inp_f, tgt_f, msk_f)


# --------------------------------------------------------------------------- #
# Public wrapper
# --------------------------------------------------------------------------- #
@functools.partial(jax.jit, static_argnames=("use_gather",))
def language_model_criterion(inp, target, mask, use_gather=None):
    """inp: [B, T, V] log-probs; target: [B, Tt] int; mask: [B, Tm] float."""
    B, T, V = inp.shape
    target = target[:, :T].astype(jnp.int32)
    mask_t = mask[:, :T].astype(jnp.float32)

    n_rows = B * T
    itemsize = jnp.dtype(inp.dtype).itemsize
    inp_f = inp.reshape(n_rows, V)          # flat view only — input never padded/copied
    tgt_f = target.reshape(n_rows, 1)
    msk_f = mask_t.reshape(n_rows, 1)

    if use_gather is None:
        use_gather = V >= _GATHER_MIN_VOCAB
    if use_gather and V >= _GATHER_SLICE:
        per_row = _gather_call(inp_f, tgt_f, msk_f, n_rows, V, itemsize)
    else:
        per_row = _scan_call(inp_f, tgt_f, msk_f, n_rows, V, itemsize)

    num = jnp.sum(per_row)
    # Denominator kept in f32 (slightly more accurate than PyTorch's input dtype);
    # an all-zero mask yields inf/NaN exactly like the PyTorch reference.
    den = jnp.sum(mask_t)
    return (num / den).astype(inp.dtype)


def _reference(inp, target, mask):
    B, T, V = inp.shape
    target = target[:, :T].astype(jnp.int32)
    mask = mask[:, :T].astype(jnp.float32)
    gathered = jnp.take_along_axis(inp.astype(jnp.float32),
                                   target[..., None], axis=2)[..., 0]
    return jnp.sum(-gathered * mask) / jnp.sum(mask)


if __name__ == "__main__":
    key = jax.random.PRNGKey(0)

    def make_case(k, B, T, V, T_extra=3):
        k1, k2, k3 = jax.random.split(k, 3)
        logits = jax.random.normal(k1, (B, T, V), dtype=jnp.float32)
        logprobs = jax.nn.log_softmax(logits, axis=-1)
        target = jax.random.randint(k2, (B, T + T_extra), 0, V, dtype=jnp.int32)
        mask = (jax.random.uniform(k3, (B, T + T_extra)) > 0.3).astype(jnp.float32)
        mask = mask.at[:, 0].set(1.0)       # avoid an all-zero mask over the window
        return logprobs, target, mask

    k_scan, k_gather = jax.random.split(key)

    # 1) streaming full-vocab scan path (small vocab)
    lp, tg, mk = make_case(k_scan, B=2, T=8, V=32)
    loss = jax.block_until_ready(language_model_criterion(lp, tg, mk, use_gather=False))
    ref = _reference(lp, tg, mk)
    assert jnp.allclose(loss, ref, rtol=1e-5, atol=1e-6), ("scan", loss, ref)

    # 2) per-row DMA-gather path (larger vocab; input stays in HBM)
    lp, tg, mk = make_case(k_gather, B=2, T=8, V=2048)
    loss = jax.block_until_ready(language_model_criterion(lp, tg, mk, use_gather=True))
    ref = _reference(lp, tg, mk)
    assert jnp.allclose(loss, ref, rtol=1e-5, atol=1e-6), ("gather", loss, ref)

    print("KERNEL_OK")
</pallas_src>

<mosaic_0001>
module attributes {stable_mosaic.version = 11 : i64} {
  func.func @_lmc_scan_kernel(%arg0: i32, %arg1: i32, %arg2: memref<8x32xf32, #tpu.memory_space<vmem>>, %arg3: memref<8x1xi32, #tpu.memory_space<vmem>>, %arg4: memref<8x1xf32, #tpu.memory_space<vmem>>, %arg5: memref<8x1xf32, #tpu.memory_space<vmem>>, %arg6: memref<8x1xf32, #tpu.memory_space<vmem>>) attributes {dimension_semantics = [#tpu.dimension_semantics<parallel>, #tpu.dimension_semantics<arbitrary>], iteration_bounds = array<i64: 2, 1>, scalar_prefetch = 0 : i64, scratch_operands = 1 : i64, tpu.core_type = #tpu.core_type<tc>, window_params = [{transform_indices = @transform_0, window_bounds = array<i64: 8, 32>}, {transform_indices = @transform_1, window_bounds = array<i64: 8, 1>}, {transform_indices = @transform_2, window_bounds = array<i64: 8, 1>}, {transform_indices = @transform_3, window_bounds = array<i64: 8, 1>}]} {
    %c0_i32 = arith.constant 0 : i32
    %0 = arith.cmpi eq, %arg1, %c0_i32 : i32
    %1 = arith.extui %0 : i1 to i32
    %c0_i32_0 = arith.constant 0 : i32
    %2 = arith.cmpi ne, %1, %c0_i32_0 : i32
    scf.if %2 {
      %cst_11 = arith.constant 0.000000e+00 : f32
      %21 = vector.broadcast %cst_11 : f32 to vector<8x1xf32>
      %c0_12 = arith.constant 0 : index
      %c0_13 = arith.constant 0 : index
      %22 = vector.load %arg6[%c0_12, %c0_13] : memref<8x1xf32, #tpu.memory_space<vmem>>, vector<8x1xf32>
      tpu.vector_store %arg6[%c0_12, %c0_13], %21 {strides = array<i32>} : memref<8x1xf32, #tpu.memory_space<vmem>>, vector<8x1xf32>,
    } else {
    }
    %c0 = arith.constant 0 : index
    %c0_1 = arith.constant 0 : index
    %3 = vector.load %arg2[%c0, %c0_1] : memref<8x32xf32, #tpu.memory_space<vmem>>, vector<8x32xf32>
    %c0_2 = arith.constant 0 : index
    %c0_3 = arith.constant 0 : index
    %4 = vector.load %arg3[%c0_2, %c0_3] : memref<8x1xi32, #tpu.memory_space<vmem>>, vector<8x1xi32>
    %c32_i32 = arith.constant 32 : i32
    %5 = arith.muli %arg1, %c32_i32 : i32
    %6 = vector.broadcast %5 : i32 to vector<8x1xi32>
    %7 = arith.subi %4, %6 : vector<8x1xi32>
    %8 = tpu.iota {dimensions = array<i32: 1>} : vector<8x32xi32>
    %9 = vector.broadcast %7 : vector<8x1xi32> to vector<8x32xi32>
    %10 = arith.cmpi eq, %8, %9 : vector<8x32xi32>
    %cst = arith.constant 0.000000e+00 : f32
    %11 = vector.broadcast %cst : f32 to vector<8x32xf32>
    %12 = arith.select %10, %3, %11 : vector<8x32xi1>, vector<8x32xf32>
    %c0_4 = arith.constant 0 : index
    %c0_5 = arith.constant 0 : index
    %13 = vector.load %arg6[%c0_4, %c0_5] : memref<8x1xf32, #tpu.memory_space<vmem>>, vector<8x1xf32>
    %cst_6 = arith.constant dense<0.000000e+00> : vector<8xf32>
    %14 = vector.multi_reduction <add>, %12, %cst_6 [1] : vector<8x32xf32> to vector<8xf32>
    %15 = vector.shape_cast %14 : vector<8xf32> to vector<8x1xf32>
    %16 = arith.addf %13, %15 : vector<8x1xf32>
    %c0_7 = arith.constant 0 : index
    %c0_8 = arith.constant 0 : index
    %17 = vector.load %arg6[%c0_7, %c0_8] : memref<8x1xf32, #tpu.memory_space<vmem>>, vector<8x1xf32>
    tpu.vector_store %arg6[%c0_7, %c0_8], %16 {strides = array<i32>} : memref<8x1xf32, #tpu.memory_space<vmem>>, vector<8x1xf32>,
    %c0_i32_9 = arith.constant 0 : i32
    %18 = arith.cmpi eq, %arg1, %c0_i32_9 : i32
    %19 = arith.extui %18 : i1 to i32
    %c0_i32_10 = arith.constant 0 : i32
    %20 = arith.cmpi ne, %19, %c0_i32_10 : i32
    scf.if %20 {
      %c0_11 = arith.constant 0 : index
      %c0_12 = arith.constant 0 : index
      %21 = vector.load %arg4[%c0_11, %c0_12] : memref<8x1xf32, #tpu.memory_space<vmem>>, vector<8x1xf32>
      %c8_i32 = arith.constant 8 : i32
      %22 = arith.muli %arg0, %c8_i32 : i32
      %23 = tpu.iota {dimensions = array<i32: 0>} : vector<8x1xi32>
      %24 = vector.broadcast %22 : i32 to vector<8x1xi32>
      %25 = arith.addi %24, %23 : vector<8x1xi32>
      %c16_i32 = arith.constant 16 : i32
      %26 = vector.broadcast %c16_i32 : i32 to vector<8x1xi32>
      %27 = arith.cmpi slt, %25, %26 : vector<8x1xi32>
      %c0_13 = arith.constant 0 : index
      %c0_14 = arith.constant 0 : index
      %28 = vector.load %arg6[%c0_13, %c0_14] : memref<8x1xf32, #tpu.memory_space<vmem>>, vector<8x1xf32>
      %cst_15 = arith.constant 0.000000e+00 : f32
      %29 = vector.broadcast %cst_15 : f32 to vector<8x1xf32>
      %30 = arith.subf %29, %28 : vector<8x1xf32>
      %31 = arith.mulf %30, %21 : vector<8x1xf32>
      %cst_16 = arith.constant 0.000000e+00 : f32
      %32 = vector.broadcast %cst_16 : f32 to vector<8x1xf32>
      %33 = arith.select %27, %31, %32 : vector<8x1xi1>, vector<8x1xf32>
      %c0_17 = arith.constant 0 : index
      %c0_18 = arith.constant 0 : index
      %34 = vector.load %arg5[%c0_17, %c0_18] : memref<8x1xf32, #tpu.memory_space<vmem>>, vector<8x1xf32>
      tpu.vector_store %arg5[%c0_17, %c0_18], %33 {strides = array<i32>} : memref<8x1xf32, #tpu.memory_space<vmem>>, vector<8x1xf32>,
    } else {
    }
    return
  }
  func.func @transform_0(%arg0: i32, %arg1: i32) -> (i32, i32) {
    %c0_i32 = arith.constant 0 : i32
    return %arg0, %arg1 : i32, i32
  }
  func.func @transform_1(%arg0: i32, %arg1: i32) -> (i32, i32) {
    %c0_i32 = arith.constant 0 : i32
    %c0_i32_0 = arith.constant 0 : i32
    return %arg0, %c0_i32 : i32, i32
  }
  func.func @transform_2(%arg0: i32, %arg1: i32) -> (i32, i32) {
    %c0_i32 = arith.constant 0 : i32
    %c0_i32_0 = arith.constant 0 : i32
    return %arg0, %c0_i32 : i32, i32
  }
  func.func @transform_3(%arg0: i32, %arg1: i32) -> (i32, i32) {
    %c0_i32 = arith.constant 0 : i32
    %c0_i32_0 = arith.constant 0 : i32
    return %arg0, %c0_i32 : i32, i32
  }
}

</mosaic_0001>

<llo_original>
// kernel: language_model_criterion.1
$region0: #{language_model_criterion.1}
  #allocation0 [shape = 'u32[]', space=smem, size = 0x4, offset = 0x4, fixed_abs, tag = 'smem constant byte address 0x4 - core index']
  #allocation1 [shape = 'u32[144,128]{1,0:T(1,128)}', space=vmem, size = 0x12000, scoped, tag = 'internal scratch']
  #allocation2 [shape = 'f32[8,1]{1,0:T(8,128)}', space=vmem, size = 0x1000, scoped, tag = 'scratch operand']
  %s0 = inlined_call_operand.vmem [shape: f32[16,32], index: 0, kind: input, shape index: {}]
  %s1 = inlined_call_operand.vmem [shape: s32[16,1], index: 1, kind: input, shape index: {}]
  %s2 = inlined_call_operand.vmem [shape: f32[16,1], index: 2, kind: input, shape index: {}]
  %s3 = inlined_call_operand.vmem [shape: f32[16,1], index: 3, kind: output, shape index: {}]
  %s4 = sld [smem:[#allocation0]]
  $region53: #{language_model_criterion.1} parent=0
    _
  %s6 = ssub.s32 1, %s4
  %s7 = scalar_select 0, %s6, %s4
  loop: start=0, step=1, limit=4
  $region2: #{language_model_criterion.1} parent=0 // loop_pre_header
    _
  $region3: #{language_model_criterion.1} parent=0 // loop_header
    %s9 = sphi 0, %s13
    %p10 = scmp.ge.s32.totalorder %s9, 4
    %s16 = sphi 0, %s28
    %s17 = sphi 0, %s24
    %s18 = sphi 0, %s16
    %s19 = sphi 0, %s17
    %s20 = sphi 0, %s18
    %s21 = sphi 0, %s19
    %s33 = sphi 0, %s35
    %s36 = sphi 0, %s33
    %s37 = sphi 0, %s36
    %s53 = sphi 0, %s37
    %s59 = sphi 0, %s61
    %s62 = sphi 0, %s59
    %s63 = sphi 0, %s62
    %s79 = sphi 0, %s63
    %s85 = sphi 0, %s87
    %s88 = sphi 0, %s85
    %s89 = sphi 0, %s88
    %s105 = sphi 0, %s89
    %s111 = sphi 0, %s113
    %s114 = sphi 0, %s111
    %s115 = sphi 0, %s114
    %s131 = sphi 0, %s115
  $region4: #{language_model_criterion.1} parent=0 // loop_header_branch
    %12 = sbr.rel (%p10) target = $region8
  $region5: #{language_model_criterion.1} parent=0 // loop_body
    %s14 = ssub.s32 %s9, 1
    %s15 = ssub.s32 %s9, 2
    %s22 = sadd.s32 1, %s17
    %p23 = scmp.ge.s32.totalorder %s22, 1
    %s24 = scalar_select %p23, 0, %s22
    %s25 = sadd.s32 1, %s16
    %s26 = scalar_select %p23, %s25, %s16
    %p27 = scmp.ge.s32.totalorder %s26, 2
    %s28 = scalar_select %p27, 0, %s26
    %s29 = ssub.s32 %s16, %s28
    %s30 = ssub.s32 %s17, %s24
    %s31 = sor.u32 %s29, %s30
    %p32 = scmp.eq.s32.totalorder %s31, 0
    %s34 = sadd.s32 %s33, 1
    %s35 = scalar_select %p32, %s33, %s34
    %p38 = pneg %p32
    %p39 = scmp.eq.s32.totalorder %s9, 1
    %p40 = por %p38, %p39
    %p41 = scmp.ne.s32.totalorder %s33, %s36
    %p42 = scmp.eq.s32.totalorder %s9, 0
    %p43 = por %p41, %p42
    %p44 = scmp.ne.s32.totalorder %s33, %s36
    %p45 = scmp.eq.s32.totalorder %s14, 1
    %p46 = por %p44, %p45
    %p47 = scmp.ne.s32.totalorder %s36, %s37
    %p48 = scmp.eq.s32.totalorder %s14, 0
    %p49 = por %p47, %p48
    %p50 = scmp.ne.s32.totalorder %s36, %s37
    %p51 = scmp.eq.s32.totalorder %s15, 1
    %p52 = por %p50, %p51
    %p54 = scmp.ne.s32.totalorder %s37, %s53
    %p55 = scmp.eq.s32.totalorder %s15, 0
    %p56 = por %p54, %p55
    %s57 = ssub.s32 %s16, %s28
    %p58 = scmp.eq.s32.totalorder %s57, 0
    %s60 = sadd.s32 %s59, 1
    %s61 = scalar_select %p58, %s59, %s60
    %p64 = pneg %p58
    %p65 = scmp.eq.s32.totalorder %s9, 1
    %p66 = por %p64, %p65
    %p67 = scmp.ne.s32.totalorder %s59, %s62
    %p68 = scmp.eq.s32.totalorder %s9, 0
    %p69 = por %p67, %p68
    %p70 = scmp.ne.s32.totalorder %s59, %s62
    %p71 = scmp.eq.s32.totalorder %s14, 1
    %p72 = por %p70, %p71
    %p73 = scmp.ne.s32.totalorder %s62, %s63
    %p74 = scmp.eq.s32.totalorder %s14, 0
    %p75 = por %p73, %p74
    %p76 = scmp.ne.s32.totalorder %s62, %s63
    %p77 = scmp.eq.s32.totalorder %s15, 1
    %p78 = por %p76, %p77
    %p80 = scmp.ne.s32.totalorder %s63, %s79
    %p81 = scmp.eq.s32.totalorder %s15, 0
    %p82 = por %p80, %p81
    %s83 = ssub.s32 %s16, %s28
    %p84 = scmp.eq.s32.totalorder %s83, 0
    %s86 = sadd.s32 %s85, 1
    %s87 = scalar_select %p84, %s85, %s86
    %p90 = pneg %p84
    %p91 = scmp.eq.s32.totalorder %s9, 1
    %p92 = por %p90, %p91
    %p93 = scmp.ne.s32.totalorder %s85, %s88
    %p94 = scmp.eq.s32.totalorder %s9, 0
    %p95 = por %p93, %p94
    %p96 = scmp.ne.s32.totalorder %s85, %s88
    %p97 = scmp.eq.s32.totalorder %s14, 1
    %p98 = por %p96, %p97
    %p99 = scmp.ne.s32.totalorder %s88, %s89
    %p100 = scmp.eq.s32.totalorder %s14, 0
    %p101 = por %p99, %p100
    %p102 = scmp.ne.s32.totalorder %s88, %s89
    %p103 = scmp.eq.s32.totalorder %s15, 1
    %p104 = por %p102, %p103
    %p106 = scmp.ne.s32.totalorder %s89, %s105
    %p107 = scmp.eq.s32.totalorder %s15, 0
    %p108 = por %p106, %p107
    %s109 = ssub.s32 %s16, %s28
    %p110 = scmp.eq.s32.totalorder %s109, 0
    %s112 = sadd.s32 %s111, 1
    %s113 = scalar_select %p110, %s111, %s112
    %p116 = pneg %p110
    %p117 = scmp.eq.s32.totalorder %s9, 1
    %p118 = por %p116, %p117
    %p119 = scmp.ne.s32.totalorder %s111, %s114
    %p120 = scmp.eq.s32.totalorder %s9, 0
    %p121 = por %p119, %p120
    %p122 = scmp.ne.s32.totalorder %s111, %s114
    %p123 = scmp.eq.s32.totalorder %s14, 1
    %p124 = por %p122, %p123
    %p125 = scmp.ne.s32.totalorder %s114, %s115
    %p126 = scmp.eq.s32.totalorder %s14, 0
    %p127 = por %p125, %p126
    %p128 = scmp.ne.s32.totalorder %s114, %s115
    %p129 = scmp.eq.s32.totalorder %s15, 1
    %p130 = por %p128, %p129
    %p132 = scmp.ne.s32.totalorder %s115, %s131
    %p133 = scmp.eq.s32.totalorder %s15, 0
    %p134 = por %p132, %p133
    %p135 = scmp.le.s32.totalorder 1, %s9
    %p136 = scmp.lt.s32.totalorder %s9, 3
    %p137 = pnand %p135, %p136
    %p138 = pneg %p137
    // Predicated region
    $region9: #{language_model_criterion.1} parent=5 // pred_check
      _
    $region10: #{language_model_criterion.1} parent=5 // pred_check_branch
      %140 = sbr.rel (%p137) target = $region12
    $region11: #{language_model_criterion.1} parent=5 // pred_region
      %s141 = ssub.s32 %s9, 1
    $region12: #{language_model_criterion.1} parent=5 // pred_fallthru
      _
    %p142 = scmp.lt.s32.totalorder %s9, 2
    // Predicated region
    $region13: #{language_model_criterion.1} parent=5 // pred_check
      %p143 = pneg %p142
    $region14: #{language_model_criterion.1} parent=5 // pred_check_branch
      %145 = sbr.rel (%p143) target = $region16
    $region15: #{language_model_criterion.1} parent=5 // pred_region
      // Predicated region
      $region17: #{language_model_criterion.1} parent=15 // pred_check
        %p146 = pneg %p43
      $region18: #{language_model_criterion.1} parent=15 // pred_check_branch
        %148 = sbr.rel (%p146) target = $region20
      $region19: #{language_model_criterion.1} parent=15 // pred_region
        %p149 = scmp.lt.s32.totalorder %s16, 1
        %s150 = scalar_select %p149, %s16, 1
        %p151 = scmp.lt.s32.totalorder %s17, 0
        %s152 = scalar_select %p151, %s17, 0
        %s153 = sadd.s32 %s152, %s150
        %s154 = smul.addr %s153, 8
        %s155 = scalar_lea.vmem %s0, %s154
      $region20: #{language_model_criterion.1} parent=15 // pred_fallthru
        _
      // Predicated region
      $region21: #{language_model_criterion.1} parent=15 // pred_check
        %p156 = pneg %p69
      $region22: #{language_model_criterion.1} parent=15 // pred_check_branch
        %158 = sbr.rel (%p156) target = $region24
      $region23: #{language_model_criterion.1} parent=15 // pred_region
        %p159 = scmp.lt.s32.totalorder %s16, 1
        %s160 = scalar_select %p159, %s16, 1
        %s161 = smul.addr %s160, 8
        %s162 = scalar_lea.vmem %s1, %s161
      $region24: #{language_model_criterion.1} parent=15 // pred_fallthru
        _
      // Predicated region
      $region25: #{language_model_criterion.1} parent=15 // pred_check
        %p163 = pneg %p95
      $region26: #{language_model_criterion.1} parent=15 // pred_check_branch
        %165 = sbr.rel (%p163) target = $region28
      $region27: #{language_model_criterion.1} parent=15 // pred_region
        %p166 = scmp.lt.s32.totalorder %s16, 1
        %s167 = scalar_select %p166, %s16, 1
        %s168 = smul.addr %s167, 8
        %s169 = scalar_lea.vmem %s2, %s168
      $region28: #{language_model_criterion.1} parent=15 // pred_fallthru
        _
    $region16: #{language_model_criterion.1} parent=5 // pred_fallthru
      _
    %p170 = scmp.le.s32.totalorder 1, %s9
    %p171 = scmp.lt.s32.totalorder %s9, 3
    %p172 = pnand %p170, %p171
    %p173 = pneg %p172
    // Predicated region
    $region29: #{language_model_criterion.1} parent=5 // pred_check
      _
    $region30: #{language_model_criterion.1} parent=5 // pred_check_branch
      %175 = sbr.rel (%p172) target = $region32
    $region31: #{language_model_criterion.1} parent=5 // pred_region
      %s176 = ssub.s32 %s9, 1
      %p177 = scmp.lt.s32.totalorder %s18, 1
      %s178 = scalar_select %p177, %s18, 1
      %p179 = scmp.lt.s32.totalorder %s19, 0
      %s180 = scalar_select %p179, %s19, 0
      %s181 = sadd.s32 %s180, %s178
      %s182 = smul.addr %s181, 8
      %s183 = scalar_lea.vmem %s0, %s182
      %p184 = pneg %p49
      %p185 = pneg %p46
      %p186 = scmp.lt.s32.totalorder %s18, 1
      %s187 = scalar_select %p186, %s18, 1
      %s188 = smul.addr %s187, 8
      %s189 = scalar_lea.vmem %s1, %s188
      %p190 = pneg %p75
      %p191 = pneg %p72
      %p192 = scmp.lt.s32.totalorder %s18, 1
      %s193 = scalar_select %p192, %s18, 1
      %s194 = smul.addr %s193, 8
      %s195 = scalar_lea.vmem %s2, %s194
      %p196 = pneg %p101
      %p197 = pneg %p98
      %p198 = pneg %p127
      %p199 = pneg %p124
      %p200 = scmp.lt.s32.totalorder %s18, 1
      %s201 = scalar_select %p200, %s18, 1
      %s202 = smul.addr %s201, 8
      %s203 = scalar_lea.vmem %s3, %s202
      %p204 = scmp.lt.s32.totalorder %s18, 1
      %s205 = scalar_select %p204, %s18, 1
      %p206 = scmp.lt.s32.totalorder %s19, 0
      %s207 = scalar_select %p206, %s19, 0
      %s208 = sadd.s32 %s207, %s205
      %s209 = smul.addr %s208, 8
      %s210 = scalar_lea.vmem %s0, %s209
      %p211 = scmp.lt.s32.totalorder %s18, 1
      %s212 = scalar_select %p211, %s18, 1
      %s213 = smul.addr %s212, 8
      %s214 = scalar_lea.vmem %s1, %s213
      %p215 = scmp.lt.s32.totalorder %s18, 1
      %s216 = scalar_select %p215, %s18, 1
      %s217 = smul.addr %s216, 8
      %s218 = scalar_lea.vmem %s2, %s217
      %p219 = scmp.lt.s32.totalorder %s18, 1
      %s220 = scalar_select %p219, %s18, 1
      %s221 = smul.addr %s220, 8
      %s222 = scalar_lea.vmem %s3, %s221
      %p223 = scmp.eq.s32.totalorder %s19, 0
      // Predicated region
      $region33: #{language_model_criterion.1} parent=31 // pred_check
        %p224 = pneg %p223
      $region34: #{language_model_criterion.1} parent=31 // pred_check_branch
        %226 = sbr.rel (%p224) target = $region36
      $region35: #{language_model_criterion.1} parent=31 // pred_region
        %vm227 = vcmask 7168
        %228 = vst.msk [vmem:[#allocation2] sm:$0xff] %vm227, 0.0
      $region36: #{language_model_criterion.1} parent=31 // pred_fallthru
        _
      %v229 = vld [vmem:[%s210] sm:$0xff]
      %v230 = vld [vmem:[%s214] sm:$0xff]
      %s231 = smul.u32 %s19, 32
      %v232 = vstv %s231
      %v233 = vsub.s32 %v230, %v232
      %v234 = vlaneseq
      %v235 = vand.u32 %v234, 127
      %236 = vset.pattern.permute.xlu0 0
      %237 = vperm.xlu0 %236, %v233
      %v238 = vpop.permute.xlu0 %237
      %vm239 = vcmp.eq.s32.totalorder %v235, %v238
      %v240 = vsel %vm239, %v229, 0.0
      %v241 = vld [vmem:[#allocation2] sm:$0xff]
      %vm242 = vcmask 261120
      %v243 = vsel %vm242, %v240, 0.0
      %244 = vadd.xlane.f32.xlu0 %v243
      %v245 = vpop.xlane.xlu0 %244
      %v246 = vadd.f32 %v241, %v245
      %vm247 = vcmask 7168
      %248 = vst.msk [vmem:[#allocation2] sm:$0xff] %vm247, %v246
      // Predicated region
      $region37: #{language_model_criterion.1} parent=31 // pred_check
        %p249 = pneg %p223
      $region38: #{language_model_criterion.1} parent=31 // pred_check_branch
        %251 = sbr.rel (%p249) target = $region40
      $region39: #{language_model_criterion.1} parent=31 // pred_region
        %v252 = vld [vmem:[%s218] sm:$0xff]
        %s253 = smul.u32 %s18, 8
        %v254 = vlaneseq
        %v255 = vshrl.u32 %v254, 7
        %v256 = vstv %s253
        %v257 = vadd.s32 %v256, %v255
        %vm258 = vcmp.lt.s32.totalorder %v257, 16
        %v259 = vld [vmem:[#allocation2] sm:$0xff]
        %v260 = vsub.f32 0.0, %v259
        %v261 = vmul.f32 %v260, %v252
        %v262 = vsel %vm258, %v261, 0.0
        %263 = vst.msk [vmem:[%s222] sm:$0xff] %vm247, %v262
      $region40: #{language_model_criterion.1} parent=31 // pred_fallthru
        _
      %p264 = scmp.lt.s32.totalorder %s18, 1
      %s265 = scalar_select %p264, %s18, 1
      %s266 = smul.addr %s265, 8
      %s267 = scalar_lea.vmem %s3, %s266
      // Predicated region
      $region41: #{language_model_criterion.1} parent=31 // pred_check
        %p268 = pneg %p124
      $region42: #{language_model_criterion.1} parent=31 // pred_check_branch
        %270 = sbr.rel (%p268) target = $region44
      $region43: #{language_model_criterion.1} parent=31 // pred_region
        _
      $region44: #{language_model_criterion.1} parent=31 // pred_fallthru
        _
    $region32: #{language_model_criterion.1} parent=5 // pred_fallthru
      _
    %p271 = scmp.le.s32.totalorder 2, %s9
    // Predicated region
    $region45: #{language_model_criterion.1} parent=5 // pred_check
      %p272 = pneg %p271
    $region46: #{language_model_criterion.1} parent=5 // pred_check_branch
      %274 = sbr.rel (%p272) target = $region48
    $region47: #{language_model_criterion.1} parent=5 // pred_region
      %s275 = ssub.s32 %s9, 2
      // Predicated region
      $region49: #{language_model_criterion.1} parent=47 // pred_check
        %p276 = pneg %p130
      $region50: #{language_model_criterion.1} parent=47 // pred_check_branch
        %278 = sbr.rel (%p276) target = $region52
      $region51: #{language_model_criterion.1} parent=47 // pred_region
        %p279 = scmp.lt.s32.totalorder %s20, 1
        %s280 = scalar_select %p279, %s20, 1
        %s281 = smul.addr %s280, 8
        %s282 = scalar_lea.vmem %s3, %s281
      $region52: #{language_model_criterion.1} parent=47 // pred_fallthru
        _
    $region48: #{language_model_criterion.1} parent=5 // pred_fallthru
      _
  $region6: #{language_model_criterion.1} parent=0 // loop_footer
    %s13 = sadd.s32 1, %s9
  $region7: #{language_model_criterion.1} parent=0 // loop_footer_branch
    %8 = sbr.rel target = $region3
  $region8: #{language_model_criterion.1} parent=0 // loop_exit
    _

</llo_original>
